<compile_context>
chip_gen: v7x
topology: tpu7x:2x2x1
jax: 0.10.0
libtpu: 0.0.40
codegen_flags: <defaults>
</compile_context>

<pallas_src>
import functools
import numpy as np
import jax
import jax.numpy as jnp
from jax.experimental import pallas as pl
from jax.experimental.pallas import tpu as pltpu


# ---------------------------------------------------------------------------
# helpers
# ---------------------------------------------------------------------------
def _round_up(x, m):
    return -(-x // m) * m


def _pick_tile(padded, cands=(512, 256, 128)):
    for c in cands:
        if padded % c == 0:
            return c
    return padded


_VMEM_LIMIT = None


def _vmem_limit_bytes():
    """Per-chip scoped-VMEM budget with headroom (v5e/v6e: ~96 MiB, v7x: ~48 MiB)."""
    global _VMEM_LIMIT
    if _VMEM_LIMIT is None:
        try:
            cap = int(pltpu.get_tpu_info().vmem_capacity_bytes)
        except Exception:
            cap = 64 * 1024 * 1024
        _VMEM_LIMIT = max(32 * 1024 * 1024, (min(cap, 128 * 1024 * 1024) * 3) // 4)
    return _VMEM_LIMIT


# ---------------------------------------------------------------------------
# Pallas linear kernel:  Y = act(X @ W + b)
# ---------------------------------------------------------------------------
def _linear_kernel(x_ref, w_ref, b_ref, o_ref, acc_ref, *, act):
    @pl.when(pl.program_id(2) == 0)
    def _():
        acc_ref[...] = jnp.zeros_like(acc_ref)

    acc_ref[...] += jnp.dot(x_ref[...], w_ref[...],
                            preferred_element_type=jnp.float32)

    @pl.when(pl.program_id(2) == pl.num_programs(2) - 1)
    def _():
        y = acc_ref[...] + b_ref[...]
        if act == "relu":
            y = jnp.maximum(y, 0.0)
        elif act == "tanh":
            y = jnp.tanh(y)
        o_ref[...] = y.astype(o_ref.dtype)


def _linear_impl(x, w, b, act):
    x = jnp.asarray(x, jnp.float32)
    w = jnp.asarray(w, jnp.float32)
    b = jnp.asarray(b, jnp.float32)
    M, K = x.shape
    K2, N = w.shape
    assert K == K2

    # pad everything to lane/sublane-aligned, MXU-friendly shapes
    Mp = _round_up(M, 128)
    Kp = _round_up(K, 128)
    Np = _round_up(N, 128)
    tm = 128
    tk = _pick_tile(Kp)
    tn = _pick_tile(Np)

    xp = jnp.pad(x, ((0, Mp - M), (0, Kp - K))).astype(jnp.bfloat16)
    wp = jnp.pad(w, ((0, Kp - K), (0, Np - N))).astype(jnp.bfloat16)
    bp = jnp.pad(b, ((0, Np - N),)).reshape(1, Np)

    out = pl.pallas_call(
        functools.partial(_linear_kernel, act=act),
        out_shape=jax.ShapeDtypeStruct((Mp, Np), jnp.float32),
        grid=(Mp // tm, Np // tn, Kp // tk),
        in_specs=[
            pl.BlockSpec((tm, tk), lambda i, j, k: (i, k)),
            pl.BlockSpec((tk, tn), lambda i, j, k: (k, j)),
            pl.BlockSpec((1, tn), lambda i, j, k: (0, j)),
        ],
        out_specs=pl.BlockSpec((tm, tn), lambda i, j, k: (i, j)),
        scratch_shapes=[pltpu.VMEM((tm, tn), jnp.float32)],
        compiler_params=pltpu.CompilerParams(
            dimension_semantics=("parallel", "parallel", "arbitrary"),
            vmem_limit_bytes=_vmem_limit_bytes()),
    )(xp, wp, bp)
    return out[:M, :N]


@functools.partial(jax.jit, static_argnames=("act",))
def _linear_jit(x, w, b, act):
    return _linear_impl(x, w, b, act)


def pallas_linear(x, w, b=None, act="none"):
    """Y = act(X @ W + b).  X:[M,K]  W:[K,N]  b:[N].  bf16 MXU, f32 accumulate."""
    w = jnp.asarray(w, jnp.float32)
    if b is None:
        b = jnp.zeros((w.shape[1],), jnp.float32)
    return _linear_jit(jnp.asarray(x, jnp.float32), w,
                       jnp.asarray(b, jnp.float32), act=act)


# ---------------------------------------------------------------------------
# Pallas RGCN layer:  h = act( X@W_loop + bias + sum_r A_r @ (X@W_r) )
# The X@W_* projections are hoisted into one Pallas matmul; the kernel below
# only does one (tile_rows, Nn) @ (Nn, D) MXU matmul per relation per row tile.
# ---------------------------------------------------------------------------
def _rgcn_kernel(adj_ref, xwr_ref, xwl_ref, b_ref, o_ref, *, num_rels, act):
    acc = xwl_ref[...] + b_ref[...]
    for r in range(num_rels):
        acc = acc + jnp.dot(adj_ref[r], xwr_ref[r],
                            preferred_element_type=jnp.float32)
    if act == "relu":
        acc = jnp.maximum(acc, 0.0)
    elif act == "tanh":
        acc = jnp.tanh(acc)
    o_ref[...] = acc


@functools.partial(jax.jit, static_argnames=("act",))
def _rgcn_jit(adj, x, w_rel, w_loop, bias, act):
    adj = jnp.asarray(adj, jnp.float32)
    x = jnp.asarray(x, jnp.float32)
    R, Nn, _ = adj.shape
    D = x.shape[1]

    # hoist the Nn*D^2 projections: one MXU matmul for [W_loop | W_r0 | ... ]
    w_cat = jnp.concatenate(
        [jnp.asarray(w_loop, jnp.float32)]
        + [jnp.asarray(w_rel, jnp.float32)[r] for r in range(R)], axis=1)
    xw = _linear_impl(x, w_cat, jnp.zeros((w_cat.shape[1],), jnp.float32), "none")
    xw_loop = xw[:, :D]                                               # [Nn, D]
    xw_rel = jnp.stack([xw[:, (r + 1) * D:(r + 2) * D] for r in range(R)],
                       axis=0)                                        # [R, Nn, D]

    Dp = _round_up(D, 128)
    Nnp = _round_up(Nn, 128)
    tr = 128                                     # destination-row tile

    adj_p = jnp.pad(adj, ((0, 0), (0, Nnp - Nn), (0, Nnp - Nn))).astype(jnp.bfloat16)
    xwr_p = jnp.pad(xw_rel, ((0, 0), (0, Nnp - Nn), (0, Dp - D))).astype(jnp.bfloat16)
    xwl_p = jnp.pad(xw_loop, ((0, Nnp - Nn), (0, Dp - D)))
    b_p = jnp.pad(jnp.asarray(bias, jnp.float32), ((0, Dp - D),)).reshape(1, Dp)

    out = pl.pallas_call(
        functools.partial(_rgcn_kernel, num_rels=R, act=act),
        out_shape=jax.ShapeDtypeStruct((Nnp, Dp), jnp.float32),
        grid=(Nnp // tr,),
        in_specs=[
            pl.BlockSpec((R, tr, Nnp), lambda i: (0, i, 0)),   # adj row tile
            pl.BlockSpec((R, Nnp, Dp), lambda i: (0, 0, 0)),   # X@W_r (resident)
            pl.BlockSpec((tr, Dp), lambda i: (i, 0)),          # X@W_loop rows
            pl.BlockSpec((1, Dp), lambda i: (0, 0)),           # bias
        ],
        out_specs=pl.BlockSpec((tr, Dp), lambda i: (i, 0)),
        compiler_params=pltpu.CompilerParams(
            dimension_semantics=("parallel",),
            vmem_limit_bytes=_vmem_limit_bytes()),
    )(adj_p, xwr_p, xwl_p, b_p)
    return out[:Nn, :D]


def pallas_rgcn_layer(adj, x, w_rel, w_loop, bias, act="relu"):
    """RelGraphConvLayer forward (self_loop=True, bias=True, dropout=0)."""
    return _rgcn_jit(jnp.asarray(adj, jnp.float32), jnp.asarray(x, jnp.float32),
                     jnp.asarray(w_rel, jnp.float32),
                     jnp.asarray(w_loop, jnp.float32),
                     jnp.asarray(bias, jnp.float32), act=act)


# ---------------------------------------------------------------------------
# Parameter construction (deterministic, no checkpoint loading)
# ---------------------------------------------------------------------------
def make_params(cfg, key):
    def nrm(k, shape, scale=0.05):
        return scale * jax.random.normal(k, shape, jnp.float32)

    keys = jax.random.split(key, 32)
    ki = iter(keys)
    gcn = cfg["gcn_dim"]
    bank = gcn * (cfg["gcn_layers"] + 1)

    p = {}
    # BERT stub
    p["word_emb"] = nrm(next(ki), (cfg["vocab"], cfg["bert_hid_size"]))
    p["enc_w"] = nrm(next(ki), (cfg["bert_hid_size"], cfg["bert_hid_size"]))
    p["enc_b"] = nrm(next(ki), (cfg["bert_hid_size"],))
    # embeddings (padding_idx=0 -> zero row)
    p["entity_type_emb"] = nrm(next(ki), (cfg["entity_type_num"],
                                          cfg["entity_type_size"])).at[0].set(0.0)
    p["entity_id_emb"] = nrm(next(ki), (cfg["max_entity_num"] + 1,
                                        cfg["entity_id_size"])).at[0].set(0.0)
    # GCN layers
    p["gcn_layers"] = []
    for _ in range(cfg["gcn_layers"]):
        p["gcn_layers"].append({
            "w_rel": nrm(next(ki), (3, gcn, gcn)),
            "w_loop": nrm(next(ki), (gcn, gcn)),
            "bias": jnp.zeros((gcn,), jnp.float32),
        })
    # edge layer: Linear(2*gcn -> gcn)
    p["edge_w"] = nrm(next(ki), (2 * gcn, gcn))
    p["edge_b"] = nrm(next(ki), (gcn,))
    # path_info_mapping: Linear(4*gcn -> 4*gcn)
    p["path_w"] = nrm(next(ki), (4 * gcn, 4 * gcn))
    p["path_b"] = nrm(next(ki), (4 * gcn,))
    # attention bilinear W: [1, bank*2, 4*gcn]
    p["attn_W"] = nrm(next(ki), (1, bank * 2, 4 * gcn))
    p["attn_b"] = nrm(next(ki), (1,))
    # predict MLP
    p["pred_w1"] = nrm(next(ki), (bank * 5 + gcn * 4, bank * 2))
    p["pred_b1"] = nrm(next(ki), (bank * 2,))
    p["pred_w2"] = nrm(next(ki), (bank * 2, cfg["relation_nums"]))
    p["pred_b2"] = nrm(next(ki), (cfg["relation_nums"],))
    return p


# ---------------------------------------------------------------------------
# GAIN_BERT forward
# ---------------------------------------------------------------------------
def gain_bert_forward(params, cfg, inputs):
    act = cfg["activation"]
    gcn_dim = cfg["gcn_dim"]
    bank_size = gcn_dim * (cfg["gcn_layers"] + 1)

    words = inputs["words"]                     # [bsz, slen] int
    bsz, slen = words.shape
    mention_id = inputs["mention_id"]           # numpy [bsz, slen]
    entity_type = inputs["entity_type"]
    entity_id = inputs["entity_id"]

    # ---- BERT stub encoder (Pallas linear) ----
    emb = params["word_emb"][jnp.asarray(words)]             # [bsz, slen, H]
    H = cfg["bert_hid_size"]
    enc = pallas_linear(emb.reshape(bsz * slen, H),
                        params["enc_w"], params["enc_b"], act="tanh")
    encoder_outputs = enc.reshape(bsz, slen, H)
    sentence_cls = encoder_outputs[:, 0, :]                  # [bsz, H]

    # ---- entity type / id embeddings ----
    if cfg["use_entity_type"]:
        encoder_outputs = jnp.concatenate(
            [encoder_outputs, params["entity_type_emb"][jnp.asarray(entity_type)]], axis=-1)
    if cfg["use_entity_id"]:
        encoder_outputs = jnp.concatenate(
            [encoder_outputs, params["entity_id_emb"][jnp.asarray(entity_id)]], axis=-1)
    sentence_cls = jnp.concatenate(
        [sentence_cls,
         jnp.zeros((bsz, cfg["entity_id_size"] + cfg["entity_type_size"]), jnp.float32)],
        axis=-1)                                             # [bsz, gcn_dim]

    # ---- mention pooling: single batched block-diagonal select matmul ----
    n_src = bsz * slen + bsz            # all word rows + one cls row per example
    node_nums, sel_blocks = [], []
    for i in range(bsz):
        mnum = int(mention_id[i].max())
        node_nums.append(mnum + 1)
        block = np.zeros((mnum + 1, n_src), np.float32)
        block[0, bsz * slen + i] = 1.0                       # sentence-cls node
        midx = np.arange(1, mnum + 1)[:, None]               # [mnum, 1]
        sel = (midx == mention_id[i][None, :]).astype(np.float32)
        wtn = sel.sum(-1, keepdims=True)
        sel = np.where(wtn > 0, sel / np.maximum(wtn, 1e-9), sel)
        block[1:, i * slen:(i + 1) * slen] = sel
        sel_blocks.append(block)
    S_mention = np.concatenate(sel_blocks, axis=0)           # [total_nodes, n_src]
    X_src = jnp.concatenate(
        [encoder_outputs.reshape(bsz * slen, gcn_dim), sentence_cls], axis=0)
    features = pallas_linear(jnp.asarray(S_mention), X_src)  # [total_nodes, gcn_dim]

    # ---- RelGraphConv layers over the batched mention graph ----
    output_features = [features]
    for layer in params["gcn_layers"]:
        features = pallas_rgcn_layer(inputs["mention_adj"], features,
                                     layer["w_rel"], layer["w_loop"],
                                     layer["bias"], act=act)
        output_features.append(features)
    output_feature = jnp.concatenate(output_features, axis=-1)   # [total_nodes, bank]

    # ---- entity pooling: single batched block-diagonal select matmul ----
    total_nodes = sum(node_nums)
    ent_blocks, ent_counts = [], []
    off = 0
    for i in range(bsz):
        sel = inputs["entity2mention_table"][i].astype(np.float32).copy()
        sel[0, 0] = 1.0
        mn = sel.sum(-1, keepdims=True)
        sel = np.where(mn > 0, sel / np.maximum(mn, 1e-9), sel)
        block = np.zeros((sel.shape[0], total_nodes), np.float32)
        block[:, off:off + node_nums[i]] = sel
        ent_blocks.append(block)
        ent_counts.append(sel.shape[0] - 1)
        off += node_nums[i]
    S_entity = np.concatenate(ent_blocks, axis=0)             # [sum(ent+1), total_nodes]
    ent_repr_all = pallas_linear(jnp.asarray(S_entity), output_feature)

    max_ent = max(ent_counts)
    node_offsets = np.cumsum([0] + node_nums[:-1])
    bank_rows, keep_idx = [], []
    roff = 0
    for i in range(bsz):
        cnt = ent_counts[i]
        rows = ent_repr_all[roff + 1: roff + 1 + cnt]
        keep_idx.extend(range(roff + 1, roff + 1 + cnt))
        if cnt < max_ent:
            rows = jnp.pad(rows, ((0, max_ent - cnt), (0, 0)))
        bank_rows.append(rows)
        roff += cnt + 1
    entity_bank = jnp.stack(bank_rows)                        # [bsz, max_ent, bank]
    global_info = output_feature[jnp.asarray(node_offsets)]   # [bsz, bank]
    entity_graph_feature = ent_repr_all[np.asarray(keep_idx)][:, -gcn_dim:]

    # ---- h/t entity gather ----
    h_t_pairs = inputs["h_t_pairs"]                           # numpy [bsz, L, 2]
    h_t_pairs = h_t_pairs + (h_t_pairs == 0).astype(np.int64) - 1
    h_t_limit = h_t_pairs.shape[1]
    hidx = jnp.asarray(h_t_pairs[:, :, 0])
    tidx = jnp.asarray(h_t_pairs[:, :, 1])
    h_entity = jnp.take_along_axis(
        entity_bank, jnp.broadcast_to(hidx[..., None], (bsz, h_t_limit, bank_size)), axis=1)
    t_entity = jnp.take_along_axis(
        entity_bank, jnp.broadcast_to(tidx[..., None], (bsz, h_t_limit, bank_size)), axis=1)
    global_info = jnp.broadcast_to(global_info[:, None, :], (bsz, h_t_limit, bank_size))

    # ---- edge layer on batched entity graph (Pallas linear) ----
    edge_src, edge_dst = [], []
    edge_index_dicts = []
    off, row = 0, 0
    for i in range(bsz):
        d = {}
        for (s, t_) in inputs["entity_graph_edges"][i]:
            edge_src.append(off + s)
            edge_dst.append(off + t_)
            d[(s, t_)] = row
            row += 1
        edge_index_dicts.append(d)
        off += inputs["entity_nums"][i]
    edge_in = jnp.concatenate([entity_graph_feature[np.array(edge_src)],
                               entity_graph_feature[np.array(edge_dst)]], axis=-1)
    edge_feat = pallas_linear(edge_in, params["edge_w"], params["edge_b"], act=act)

    # ---- path info (host-side ragged loop; Attention softmax over a size-1 axis
    #      is all-ones, matching the reference nn.Softmax(dim=-1) on [mid,1]) ----
    relation_mask = inputs["relation_mask"]
    path_table = inputs["path_table"]
    path_rows = [[jnp.zeros((gcn_dim * 4,), jnp.float32) for _ in range(h_t_limit)]
                 for _ in range(bsz)]
    for i in range(bsz):
        path_t = path_table[i]
        e_dict = edge_index_dicts[i]
        for j in range(h_t_limit):
            if relation_mask is not None and relation_mask[i, j] == 0:
                break
            h = int(h_t_pairs[i, j, 0])
            t = int(h_t_pairs[i, j, 1])
            if relation_mask is None and h == 0 and t == 0:
                continue
            if (h + 1, t + 1) in path_t:
                v = [val - 1 for val in path_t[(h + 1, t + 1)]]
            elif (t + 1, h + 1) in path_t:
                v = [val - 1 for val in path_t[(t + 1, h + 1)]]
            else:
                raise AssertionError("missing path")
            if len(v) == 0:
                continue
            ff = edge_feat[np.array([e_dict[(h, m)] for m in v])]
            fs = edge_feat[np.array([e_dict[(m, t)] for m in v])]
            bf = edge_feat[np.array([e_dict[(t, m)] for m in v])]
            bs = edge_feat[np.array([e_dict[(m, h)] for m in v])]
            tmp = jnp.concatenate([ff, fs, bf, bs], axis=-1)       # [mid, 4*gcn]
            src = jnp.concatenate([h_entity[i, j], t_entity[i, j]])
            score = jnp.einsum("s,ost,mt->mo", src, params["attn_W"], tmp) + params["attn_b"]
            score = jax.nn.softmax(score, axis=-1)                 # size-1 axis -> ones
            attn_value = (score.T @ tmp)[0]
            path_rows[i][j] = attn_value
    path_info = jnp.stack([jnp.stack(r) for r in path_rows])        # [bsz, L, 4*gcn]

    # ---- path_info mapping + activation (Pallas) ----
    path_info = pallas_linear(path_info.reshape(bsz * h_t_limit, gcn_dim * 4),
                              params["path_w"], params["path_b"], act=act)
    path_info = path_info.reshape(bsz, h_t_limit, gcn_dim * 4)

    # ---- predict MLP (Pallas) ----
    feat = jnp.concatenate(
        [h_entity, t_entity, jnp.abs(h_entity - t_entity),
         h_entity * t_entity, global_info, path_info], axis=-1)
    feat = feat.reshape(bsz * h_t_limit, -1)
    hdn = pallas_linear(feat, params["pred_w1"], params["pred_b1"], act=act)
    preds = pallas_linear(hdn, params["pred_w2"], params["pred_b2"], act="none")
    return preds.reshape(bsz, h_t_limit, cfg["relation_nums"])


# ---------------------------------------------------------------------------
# Deterministic synthetic inputs
# ---------------------------------------------------------------------------
def build_norm_adj(edges_per_rel, num_nodes):
    adjs = []
    for rel in ["intra", "inter", "global"]:
        A = np.zeros((num_nodes, num_nodes), np.float32)
        for (s, d) in edges_per_rel[rel]:
            A[d, s] += 1.0
        deg = A.sum(axis=1, keepdims=True)
        A = np.where(deg > 0, A / np.maximum(deg, 1.0), A)
        adjs.append(A)
    return np.stack(adjs)


if __name__ == "__main__":
    cfg = dict(activation="relu", use_entity_type=True, use_entity_id=True,
               use_semantic_entity_embedding=False, use_f_entity_type=False,
               entity_type_num=8, entity_type_size=8, entity_type_pad=0,
               max_entity_num=10, entity_id_size=8, entity_id_pad=0,
               bert_hid_size=32, gcn_dim=48, gcn_layers=2, relation_nums=10,
               dropout=0.0, vocab=30)
    assert cfg["gcn_dim"] == cfg["bert_hid_size"] + cfg["entity_id_size"] + cfg["entity_type_size"]

    key = jax.random.PRNGKey(0)
    pkey, wkey = jax.random.split(key)
    params = make_params(cfg, pkey)

    bsz, slen, h_t_limit = 2, 16, 4
    words = np.array(jax.random.randint(wkey, (bsz, slen), 0, cfg["vocab"]))
    mask = np.ones((bsz, slen), np.int32)   # unused by the encoder stub

    mention_id = np.zeros((bsz, slen), np.int64)
    mention_id[0, [1, 2]] = 1; mention_id[0, [5, 6]] = 2; mention_id[0, [9, 10]] = 3
    mention_id[1, [2, 3]] = 1; mention_id[1, [6]] = 2; mention_id[1, [11, 12, 13]] = 3
    entity_id = mention_id.copy()                        # 1:1 mention -> entity
    entity_type = np.where(mention_id > 0, (mention_id % 7) + 1, 0).astype(np.int64)

    # batched mention graph: 2 graphs x 4 nodes (node 0 = sentence cls)
    edges = {"intra": [], "inter": [], "global": []}
    for off in (0, 4):
        edges["intra"] += [(off + 1, off + 2), (off + 2, off + 1),
                           (off + 2, off + 3), (off + 3, off + 2)]
        edges["inter"] += [(off + 1, off + 3), (off + 3, off + 1)]
        for k in (1, 2, 3):
            edges["global"] += [(off, off + k), (off + k, off)]
    mention_adj = build_norm_adj(edges, 8)

    # entity2mention table: [entity_num+1, node_num] per batch, entity k <-> mention k
    e2m = np.eye(4, dtype=np.float32)
    e2m[0, 0] = 0.0
    entity2mention_table = [e2m.copy(), e2m.copy()]

    # entity graphs: 3 entities each, fully connected (no self loops)
    eg_edges = [(s, d) for s in range(3) for d in range(3) if s != d]
    entity_graph_edges = [list(eg_edges), list(eg_edges)]
    entity_nums = [3, 3]

    h_t_pairs = np.zeros((bsz, h_t_limit, 2), np.int64)
    h_t_pairs[0, 0] = [1, 2]; h_t_pairs[0, 1] = [2, 3]
    h_t_pairs[1, 0] = [1, 3]
    relation_mask = np.array([[1, 1, 0, 0], [1, 0, 0, 0]], np.int64)
    path_table = [{(1, 2): [3], (2, 3): [1]}, {(1, 3): [2]}]

    inputs = dict(words=words, mask=mask, entity_type=entity_type,
                  entity_id=entity_id, mention_id=mention_id,
                  mention_adj=mention_adj,
                  entity2mention_table=entity2mention_table,
                  entity_graph_edges=entity_graph_edges,
                  entity_nums=entity_nums,
                  h_t_pairs=h_t_pairs, relation_mask=relation_mask,
                  path_table=path_table)

    preds = gain_bert_forward(params, cfg, inputs)
    preds = jax.block_until_ready(preds)
    assert preds.shape == (bsz, h_t_limit, cfg["relation_nums"])
    assert np.all(np.isfinite(np.array(preds)))
    print("KERNEL_OK")
</pallas_src>

<mosaic_0001>
module attributes {stable_mosaic.version = 11 : i64} {
  func.func @_linear_kernel(%arg0: i32, %arg1: i32, %arg2: i32, %arg3: memref<128x128xbf16, #tpu.memory_space<vmem>>, %arg4: memref<128x128xbf16, #tpu.memory_space<vmem>>, %arg5: memref<1x128xf32, #tpu.memory_space<vmem>>, %arg6: memref<128x128xf32, #tpu.memory_space<vmem>>, %arg7: memref<128x128xf32, #tpu.memory_space<vmem>>) attributes {dimension_semantics = [#tpu.dimension_semantics<parallel>, #tpu.dimension_semantics<parallel>, #tpu.dimension_semantics<arbitrary>], iteration_bounds = array<i64: 1, 1, 1>, scalar_prefetch = 0 : i64, scratch_operands = 1 : i64, tpu.core_type = #tpu.core_type<tc>, window_params = [{transform_indices = @transform_0, window_bounds = array<i64: 128, 128>}, {transform_indices = @transform_1, window_bounds = array<i64: 128, 128>}, {transform_indices = @transform_2, window_bounds = array<i64: 1, 128>}, {transform_indices = @transform_3, window_bounds = array<i64: 128, 128>}]} {
    %c0_i32 = arith.constant 0 : i32
    %0 = arith.cmpi eq, %arg2, %c0_i32 : i32
    %1 = arith.extui %0 : i1 to i32
    %c0_i32_0 = arith.constant 0 : i32
    %2 = arith.cmpi ne, %1, %c0_i32_0 : i32
    scf.if %2 {
      %cst_10 = arith.constant 0.000000e+00 : f32
      %12 = vector.broadcast %cst_10 : f32 to vector<128x128xf32>
      %c0_11 = arith.constant 0 : index
      %c0_12 = arith.constant 0 : index
      %13 = vector.load %arg7[%c0_11, %c0_12] : memref<128x128xf32, #tpu.memory_space<vmem>>, vector<128x128xf32>
      tpu.vector_store %arg7[%c0_11, %c0_12], %12 {strides = array<i32>} : memref<128x128xf32, #tpu.memory_space<vmem>>, vector<128x128xf32>,
    } else {
    }
    %c0 = arith.constant 0 : index
    %c0_1 = arith.constant 0 : index
    %3 = vector.load %arg7[%c0, %c0_1] : memref<128x128xf32, #tpu.memory_space<vmem>>, vector<128x128xf32>
    %c0_2 = arith.constant 0 : index
    %c0_3 = arith.constant 0 : index
    %4 = vector.load %arg3[%c0_2, %c0_3] : memref<128x128xbf16, #tpu.memory_space<vmem>>, vector<128x128xbf16>
    %c0_4 = arith.constant 0 : index
    %c0_5 = arith.constant 0 : index
    %5 = vector.load %arg4[%c0_4, %c0_5] : memref<128x128xbf16, #tpu.memory_space<vmem>>, vector<128x128xbf16>
    %cst = arith.constant dense<0.000000e+00> : vector<128x128xf32>
    %6 = tpu.matmul %4, %5, %cst {dimension_numbers = #tpu.dot_dimension_numbers<[1], [0], [0], [1], [0, 0, 1, 1], [], []>} : vector<128x128xbf16>, vector<128x128xbf16>, vector<128x128xf32> -> vector<128x128xf32>
    %7 = arith.addf %3, %6 : vector<128x128xf32>
    %c0_6 = arith.constant 0 : index
    %c0_7 = arith.constant 0 : index
    %8 = vector.load %arg7[%c0_6, %c0_7] : memref<128x128xf32, #tpu.memory_space<vmem>>, vector<128x128xf32>
    tpu.vector_store %arg7[%c0_6, %c0_7], %7 {strides = array<i32>} : memref<128x128xf32, #tpu.memory_space<vmem>>, vector<128x128xf32>,
    %c0_i32_8 = arith.constant 0 : i32
    %9 = arith.cmpi eq, %arg2, %c0_i32_8 : i32
    %10 = arith.extui %9 : i1 to i32
    %c0_i32_9 = arith.constant 0 : i32
    %11 = arith.cmpi ne, %10, %c0_i32_9 : i32
    scf.if %11 {
      %c0_10 = arith.constant 0 : index
      %c0_11 = arith.constant 0 : index
      %12 = vector.load %arg7[%c0_10, %c0_11] : memref<128x128xf32, #tpu.memory_space<vmem>>, vector<128x128xf32>
      %c0_12 = arith.constant 0 : index
      %c0_13 = arith.constant 0 : index
      %13 = vector.load %arg5[%c0_12, %c0_13] : memref<1x128xf32, #tpu.memory_space<vmem>>, vector<1x128xf32>
      %14 = vector.broadcast %13 : vector<1x128xf32> to vector<128x128xf32>
      %15 = arith.addf %12, %14 : vector<128x128xf32>
      %16 = math.tanh %15 : vector<128x128xf32>
      %c0_14 = arith.constant 0 : index
      %c0_15 = arith.constant 0 : index
      %17 = vector.load %arg6[%c0_14, %c0_15] : memref<128x128xf32, #tpu.memory_space<vmem>>, vector<128x128xf32>
      tpu.vector_store %arg6[%c0_14, %c0_15], %16 {strides = array<i32>} : memref<128x128xf32, #tpu.memory_space<vmem>>, vector<128x128xf32>,
    } else {
    }
    return
  }
  func.func @transform_0(%arg0: i32, %arg1: i32, %arg2: i32) -> (i32, i32) {
    %c0_i32 = arith.constant 0 : i32
    return %arg0, %arg2 : i32, i32
  }
  func.func @transform_1(%arg0: i32, %arg1: i32, %arg2: i32) -> (i32, i32) {
    %c0_i32 = arith.constant 0 : i32
    return %arg2, %arg1 : i32, i32
  }
  func.func @transform_2(%arg0: i32, %arg1: i32, %arg2: i32) -> (i32, i32) {
    %c0_i32 = arith.constant 0 : i32
    %c0_i32_0 = arith.constant 0 : i32
    return %c0_i32, %arg1 : i32, i32
  }
  func.func @transform_3(%arg0: i32, %arg1: i32, %arg2: i32) -> (i32, i32) {
    %c0_i32 = arith.constant 0 : i32
    return %arg0, %arg1 : i32, i32
  }
}

</mosaic_0001>

<llo_original>
// kernel: _linear_jit.1
$region0: #{_linear_jit.1}
  #allocation0 [shape = 'u32[]', space=smem, size = 0x4, offset = 0x4, fixed_abs, tag = 'smem constant byte address 0x4 - core index']
  #allocation1 [shape = 'u32[144,128]{1,0:T(1,128)}', space=vmem, size = 0x12000, scoped, tag = 'internal scratch']
  #allocation2 [shape = 'f32[128,128]{1,0:T(8,128)}', space=vmem, size = 0x10000, scoped, tag = 'scratch operand']
  %s0 = inlined_call_operand.vmem [shape: bf16[128,128], index: 0, kind: input, shape index: {}]
  %s1 = inlined_call_operand.vmem [shape: bf16[128,128], index: 1, kind: input, shape index: {}]
  %s2 = inlined_call_operand.vmem [shape: f32[1,128], index: 2, kind: input, shape index: {}]
  %s3 = inlined_call_operand.vmem [shape: f32[128,128], index: 3, kind: output, shape index: {}]
  %s4 = sld [smem:[#allocation0]]
  $region30: #{_linear_jit.1} parent=0
    _
  %s6 = ssub.s32 1, %s4
  %s7 = scalar_select 0, %s6, %s4
  // Predicated region
  $region2: #{_linear_jit.1} parent=0 // pred_check
    _
  $region3: #{_linear_jit.1} parent=0 // pred_check_branch
    %9 = sbr.rel (0) target = $region5
  $region4: #{_linear_jit.1} parent=0 // pred_region
    _
  $region5: #{_linear_jit.1} parent=0 // pred_fallthru
    _
  // Predicated region
  $region6: #{_linear_jit.1} parent=0 // pred_check
    _
  $region7: #{_linear_jit.1} parent=0 // pred_check_branch
    %11 = sbr.rel (0) target = $region9
  $region8: #{_linear_jit.1} parent=0 // pred_region
    _
  $region9: #{_linear_jit.1} parent=0 // pred_fallthru
    _
  // Predicated region
  $region10: #{_linear_jit.1} parent=0 // pred_check
    _
  $region11: #{_linear_jit.1} parent=0 // pred_check_branch
    %13 = sbr.rel (0) target = $region13
  $region12: #{_linear_jit.1} parent=0 // pred_region
    _
  $region13: #{_linear_jit.1} parent=0 // pred_fallthru
    _
  %p15 = scmp.eq.s32.totalorder 0, 0
  // Predicated region
  $region14: #{_linear_jit.1} parent=0 // pred_check
    %p16 = pneg %p15
  $region15: #{_linear_jit.1} parent=0 // pred_check_branch
    %18 = sbr.rel (%p16) target = $region17
  $region16: #{_linear_jit.1} parent=0 // pred_region
    %19 = vst [vmem:[#allocation2] sm:$0xff] 0.0
    %20 = vst [vmem:[#allocation2 + $0x8] sm:$0xff] 0.0
    %21 = vst [vmem:[#allocation2 + $0x10] sm:$0xff] 0.0
    %22 = vst [vmem:[#allocation2 + $0x18] sm:$0xff] 0.0
    %23 = vst [vmem:[#allocation2 + $0x20] sm:$0xff] 0.0
    %24 = vst [vmem:[#allocation2 + $0x28] sm:$0xff] 0.0
    %25 = vst [vmem:[#allocation2 + $0x30] sm:$0xff] 0.0
    %26 = vst [vmem:[#allocation2 + $0x38] sm:$0xff] 0.0
    %27 = vst [vmem:[#allocation2 + $0x40] sm:$0xff] 0.0
    %28 = vst [vmem:[#allocation2 + $0x48] sm:$0xff] 0.0
    %29 = vst [vmem:[#allocation2 + $0x50] sm:$0xff] 0.0
    %30 = vst [vmem:[#allocation2 + $0x58] sm:$0xff] 0.0
    %31 = vst [vmem:[#allocation2 + $0x60] sm:$0xff] 0.0
    %32 = vst [vmem:[#allocation2 + $0x68] sm:$0xff] 0.0
    %33 = vst [vmem:[#allocation2 + $0x70] sm:$0xff] 0.0
    %34 = vst [vmem:[#allocation2 + $0x78] sm:$0xff] 0.0
  $region17: #{_linear_jit.1} parent=0 // pred_fallthru
    _
  %v35 = vld [vmem:[#allocation2] sm:$0xff]
  %v36 = vld [vmem:[#allocation2 + $0x8] sm:$0xff]
  %v37 = vld [vmem:[#allocation2 + $0x10] sm:$0xff]
  %v38 = vld [vmem:[#allocation2 + $0x18] sm:$0xff]
  %v39 = vld [vmem:[#allocation2 + $0x20] sm:$0xff]
  %v40 = vld [vmem:[#allocation2 + $0x28] sm:$0xff]
  %v41 = vld [vmem:[#allocation2 + $0x30] sm:$0xff]
  %v42 = vld [vmem:[#allocation2 + $0x38] sm:$0xff]
  %v43 = vld [vmem:[#allocation2 + $0x40] sm:$0xff]
  %v44 = vld [vmem:[#allocation2 + $0x48] sm:$0xff]
  %v45 = vld [vmem:[#allocation2 + $0x50] sm:$0xff]
  %v46 = vld [vmem:[#allocation2 + $0x58] sm:$0xff]
  %v47 = vld [vmem:[#allocation2 + $0x60] sm:$0xff]
  %v48 = vld [vmem:[#allocation2 + $0x68] sm:$0xff]
  %v49 = vld [vmem:[#allocation2 + $0x70] sm:$0xff]
  %v50 = vld [vmem:[#allocation2 + $0x78] sm:$0xff]
  %v51 = vld [vmem:[%s0] sm:$0xf]
  %v52 = vld [vmem:[%s0 + $0x4] sm:$0xf]
  %v53 = vld [vmem:[%s0 + $0x8] sm:$0xf]
  %v54 = vld [vmem:[%s0 + $0xc] sm:$0xf]
  %v55 = vld [vmem:[%s0 + $0x10] sm:$0xf]
  %v56 = vld [vmem:[%s0 + $0x14] sm:$0xf]
  %v57 = vld [vmem:[%s0 + $0x18] sm:$0xf]
  %v58 = vld [vmem:[%s0 + $0x1c] sm:$0xf]
  %v59 = vld [vmem:[%s0 + $0x20] sm:$0xf]
  %v60 = vld [vmem:[%s0 + $0x24] sm:$0xf]
  %v61 = vld [vmem:[%s0 + $0x28] sm:$0xf]
  %v62 = vld [vmem:[%s0 + $0x2c] sm:$0xf]
  %v63 = vld [vmem:[%s0 + $0x30] sm:$0xf]
  %v64 = vld [vmem:[%s0 + $0x34] sm:$0xf]
  %v65 = vld [vmem:[%s0 + $0x38] sm:$0xf]
  %v66 = vld [vmem:[%s0 + $0x3c] sm:$0xf]
  %v67 = vld [vmem:[%s1] sm:$0xf]
  %v68 = vld [vmem:[%s1 + $0x4] sm:$0xf]
  %v69 = vld [vmem:[%s1 + $0x8] sm:$0xf]
  %v70 = vld [vmem:[%s1 + $0xc] sm:$0xf]
  %v71 = vld [vmem:[%s1 + $0x10] sm:$0xf]
  %v72 = vld [vmem:[%s1 + $0x14] sm:$0xf]
  %v73 = vld [vmem:[%s1 + $0x18] sm:$0xf]
  %v74 = vld [vmem:[%s1 + $0x1c] sm:$0xf]
  %v75 = vld [vmem:[%s1 + $0x20] sm:$0xf]
  %v76 = vld [vmem:[%s1 + $0x24] sm:$0xf]
  %v77 = vld [vmem:[%s1 + $0x28] sm:$0xf]
  %v78 = vld [vmem:[%s1 + $0x2c] sm:$0xf]
  %v79 = vld [vmem:[%s1 + $0x30] sm:$0xf]
  %v80 = vld [vmem:[%s1 + $0x34] sm:$0xf]
  %v81 = vld [vmem:[%s1 + $0x38] sm:$0xf]
  %v82 = vld [vmem:[%s1 + $0x3c] sm:$0xf]
  %v99 = vunpack.c.l.b16 %v51
  %v100 = vunpack.c.l.b16 %v52
  %v101 = vunpack.c.l.b16 %v53
  %v102 = vunpack.c.l.b16 %v54
  %v103 = vunpack.c.l.b16 %v55
  %v104 = vunpack.c.l.b16 %v56
  %v105 = vunpack.c.l.b16 %v57
  %v106 = vunpack.c.l.b16 %v58
  %v107 = vunpack.c.l.b16 %v59
  %v108 = vunpack.c.l.b16 %v60
  %v109 = vunpack.c.l.b16 %v61
  %v110 = vunpack.c.l.b16 %v62
  %v111 = vunpack.c.l.b16 %v63
  %v112 = vunpack.c.l.b16 %v64
  %v113 = vunpack.c.l.b16 %v65
  %v114 = vunpack.c.l.b16 %v66
  %v115 = vpack.c.b16 %v100, %v99
  %v116 = vpack.c.b16 %v102, %v101
  %v117 = vpack.c.b16 %v104, %v103
  %v118 = vpack.c.b16 %v106, %v105
  %v119 = vpack.c.b16 %v108, %v107
  %v120 = vpack.c.b16 %v110, %v109
  %v121 = vpack.c.b16 %v112, %v111
  %v122 = vpack.c.b16 %v114, %v113
  %v147 = vunpack.c.l.b16 %v67
  %v148 = vunpack.c.l.b16 %v68
  %v149 = vunpack.c.l.b16 %v69
  %v150 = vunpack.c.l.b16 %v70
  %v151 = vunpack.c.l.b16 %v71
  %v152 = vunpack.c.l.b16 %v72
  %v153 = vunpack.c.l.b16 %v73
  %v154 = vunpack.c.l.b16 %v74
  %v155 = vunpack.c.l.b16 %v75
  %v156 = vunpack.c.l.b16 %v76
  %v157 = vunpack.c.l.b16 %v77
  %v158 = vunpack.c.l.b16 %v78
  %v159 = vunpack.c.l.b16 %v79
  %v160 = vunpack.c.l.b16 %v80
  %v161 = vunpack.c.l.b16 %v81
  %v162 = vunpack.c.l.b16 %v82
  %v163 = vpack.c.b16 %v148, %v147
  %v164 = vpack.c.b16 %v150, %v149
  %v165 = vpack.c.b16 %v152, %v151
  %v166 = vpack.c.b16 %v154, %v153
  %v167 = vpack.c.b16 %v156, %v155
  %v168 = vpack.c.b16 %v158, %v157
  %v169 = vpack.c.b16 %v160, %v159
  %v170 = vpack.c.b16 %v162, %v161
  %179 = vmatprep.subr.bf16.mxu0 0
  %180 = vmatpush1.bf16.msra.mxu0 %v163
  %181 = vmatprep.subr.bf16.mxu0 0
  %182 = vmatpush1.bf16.msra.mxu0 %v164
  %183 = vmatprep.subr.bf16.mxu0 0
  %184 = vmatpush1.bf16.msra.mxu0 %v165
  %185 = vmatprep.subr.bf16.mxu0 0
  %186 = vmatpush1.bf16.msra.mxu0 %v166
  %187 = vmatprep.subr.bf16.mxu0 0
  %188 = vmatpush1.bf16.msra.mxu0 %v167
  %189 = vmatprep.subr.bf16.mxu0 0
  %190 = vmatpush1.bf16.msra.mxu0 %v168
  %191 = vmatprep.subr.bf16.mxu0 0
  %192 = vmatpush1.bf16.msra.mxu0 %v169
  %193 = vmatprep.subr.bf16.mxu0 0
  %194 = vmatpush1.bf16.msra.mxu0 %v170
  %195 = vmatprep.subr.bf16.mxu0 0
  %196 = vmatpush1.bf16.msra.mxu0 0
  %197 = vmatprep.subr.bf16.mxu0 0
  %198 = vmatpush1.bf16.msra.mxu0 0
  %199 = vmatprep.subr.bf16.mxu0 0
  %200 = vmatpush1.bf16.msra.mxu0 0
  %201 = vmatprep.subr.bf16.mxu0 0
  %202 = vmatpush1.bf16.msra.mxu0 0
  %203 = vmatprep.subr.bf16.mxu0 0
  %204 = vmatpush1.bf16.msra.mxu0 0
  %205 = vmatprep.subr.bf16.mxu0 0
  %206 = vmatpush1.bf16.msra.mxu0 0
  %207 = vmatprep.subr.bf16.mxu0 0
  %208 = vmatpush1.bf16.msra.mxu0 0
  %209 = vmatprep.subr.bf16.mxu0 0
  %210 = vmatpush1.bf16.msra.mxu0 0
  %211 = vmatprep.mubr.bf16.mxu0 0
  %212 = vmatmul.mubr.bf16.gmra.mrb[0].mxu0 %v115
  %v213 = vpop.f32.mrb[0].mxu0
  %v214 = vadd.f32 0.0, %v213
  %v215 = vpop.f32.mrb[0].mxu0
  %v216 = vpop.f32.mrb[0].mxu0
  %v217 = vadd.f32 0.0, %v216
  %v218 = vpop.f32.mrb[0].mxu0
  %219 = vmatprep.mubr.bf16.mxu0 0
  %220 = vmatmul.mubr.bf16.gmra.mrb[0].mxu0 %v116
  %v221 = vpop.f32.mrb[0].mxu0
  %v222 = vadd.f32 0.0, %v221
  %v223 = vpop.f32.mrb[0].mxu0
  %v224 = vpop.f32.mrb[0].mxu0
  %v225 = vadd.f32 0.0, %v224
  %v226 = vpop.f32.mrb[0].mxu0
  %227 = vmatprep.mubr.bf16.mxu0 0
  %228 = vmatmul.mubr.bf16.gmra.mrb[0].mxu0 %v117
  %v229 = vpop.f32.mrb[0].mxu0
  %v230 = vadd.f32 0.0, %v229
  %v231 = vpop.f32.mrb[0].mxu0
  %v232 = vpop.f32.mrb[0].mxu0
  %v233 = vadd.f32 0.0, %v232
  %v234 = vpop.f32.mrb[0].mxu0
  %235 = vmatprep.mubr.bf16.mxu0 0
  %236 = vmatmul.mubr.bf16.gmra.mrb[0].mxu0 %v118
  %v237 = vpop.f32.mrb[0].mxu0
  %v238 = vadd.f32 0.0, %v237
  %v239 = vpop.f32.mrb[0].mxu0
  %v240 = vpop.f32.mrb[0].mxu0
  %v241 = vadd.f32 0.0, %v240
  %v242 = vpop.f32.mrb[0].mxu0
  %243 = vmatprep.mubr.bf16.mxu0 0
  %244 = vmatmul.mubr.bf16.gmra.mrb[0].mxu0 %v119
  %v245 = vpop.f32.mrb[0].mxu0
  %v246 = vadd.f32 0.0, %v245
  %v247 = vpop.f32.mrb[0].mxu0
  %v248 = vpop.f32.mrb[0].mxu0
  %v249 = vadd.f32 0.0, %v248
  %v250 = vpop.f32.mrb[0].mxu0
  %251 = vmatprep.mubr.bf16.mxu0 0
  %252 = vmatmul.mubr.bf16.gmra.mrb[0].mxu0 %v120
  %v253 = vpop.f32.mrb[0].mxu0
  %v254 = vadd.f32 0.0, %v253
  %v255 = vpop.f32.mrb[0].mxu0
  %v256 = vpop.f32.mrb[0].mxu0
  %v257 = vadd.f32 0.0, %v256
  %v258 = vpop.f32.mrb[0].mxu0
  %259 = vmatprep.mubr.bf16.mxu0 0
  %260 = vmatmul.mubr.bf16.gmra.mrb[0].mxu0 %v121
  %v261 = vpop.f32.mrb[0].mxu0
  %v262 = vadd.f32 0.0, %v261
  %v263 = vpop.f32.mrb[0].mxu0
  %v264 = vpop.f32.mrb[0].mxu0
  %v265 = vadd.f32 0.0, %v264
  %v266 = vpop.f32.mrb[0].mxu0
  %267 = vmatprep.mubr.bf16.mxu0 0
  %268 = vmatmul.mubr.bf16.gmra.mrb[0].mxu0 %v122
  %v269 = vpop.f32.mrb[0].mxu0
  %v270 = vadd.f32 0.0, %v269
  %v271 = vpop.f32.mrb[0].mxu0
  %v272 = vpop.f32.mrb[0].mxu0
  %v273 = vadd.f32 0.0, %v272
  %v274 = vpop.f32.mrb[0].mxu0
  %275 = vdwg.mxu0
  %v276 = vadd.f32 %v35, %v214
  %v277 = vadd.f32 %v36, %v217
  %v278 = vadd.f32 %v37, %v222
  %v279 = vadd.f32 %v38, %v225
  %v280 = vadd.f32 %v39, %v230
  %v281 = vadd.f32 %v40, %v233
  %v282 = vadd.f32 %v41, %v238
  %v283 = vadd.f32 %v42, %v241
  %v284 = vadd.f32 %v43, %v246
  %v285 = vadd.f32 %v44, %v249
  %v286 = vadd.f32 %v45, %v254
  %v287 = vadd.f32 %v46, %v257
  %v288 = vadd.f32 %v47, %v262
  %v289 = vadd.f32 %v48, %v265
  %v290 = vadd.f32 %v49, %v270
  %v291 = vadd.f32 %v50, %v273
  %292 = vst [vmem:[#allocation2] sm:$0xff] %v276
  %293 = vst [vmem:[#allocation2 + $0x8] sm:$0xff] %v277
  %294 = vst [vmem:[#allocation2 + $0x10] sm:$0xff] %v278
  %295 = vst [vmem:[#allocation2 + $0x18] sm:$0xff] %v279
  %296 = vst [vmem:[#allocation2 + $0x20] sm:$0xff] %v280
  %297 = vst [vmem:[#allocation2 + $0x28] sm:$0xff] %v281
  %298 = vst [vmem:[#allocation2 + $0x30] sm:$0xff] %v282
  %299 = vst [vmem:[#allocation2 + $0x38] sm:$0xff] %v283
  %300 = vst [vmem:[#allocation2 + $0x40] sm:$0xff] %v284
  %301 = vst [vmem:[#allocation2 + $0x48] sm:$0xff] %v285
  %302 = vst [vmem:[#allocation2 + $0x50] sm:$0xff] %v286
  %303 = vst [vmem:[#allocation2 + $0x58] sm:$0xff] %v287
  %304 = vst [vmem:[#allocation2 + $0x60] sm:$0xff] %v288
  %305 = vst [vmem:[#allocation2 + $0x68] sm:$0xff] %v289
  %306 = vst [vmem:[#allocation2 + $0x70] sm:$0xff] %v290
  %307 = vst [vmem:[#allocation2 + $0x78] sm:$0xff] %v291
  // Predicated region
  $region18: #{_linear_jit.1} parent=0 // pred_check
    %p308 = pneg %p15
  $region19: #{_linear_jit.1} parent=0 // pred_check_branch
    %310 = sbr.rel (%p308) target = $region21
  $region20: #{_linear_jit.1} parent=0 // pred_region
    %v311 = vld [vmem:[#allocation2] sm:$0xff]
    %v312 = vld [vmem:[#allocation2 + $0x8] sm:$0xff]
    %v313 = vld [vmem:[#allocation2 + $0x10] sm:$0xff]
    %v314 = vld [vmem:[#allocation2 + $0x18] sm:$0xff]
    %v315 = vld [vmem:[#allocation2 + $0x20] sm:$0xff]
    %v316 = vld [vmem:[#allocation2 + $0x28] sm:$0xff]
    %v317 = vld [vmem:[#allocation2 + $0x30] sm:$0xff]
    %v318 = vld [vmem:[#allocation2 + $0x38] sm:$0xff]
    %v319 = vld [vmem:[#allocation2 + $0x40] sm:$0xff]
    %v320 = vld [vmem:[#allocation2 + $0x48] sm:$0xff]
    %v321 = vld [vmem:[#allocation2 + $0x50] sm:$0xff]
    %v322 = vld [vmem:[#allocation2 + $0x58] sm:$0xff]
    %v323 = vld [vmem:[#allocation2 + $0x60] sm:$0xff]
    %v324 = vld [vmem:[#allocation2 + $0x68] sm:$0xff]
    %v325 = vld [vmem:[#allocation2 + $0x70] sm:$0xff]
    %v326 = vld [vmem:[#allocation2 + $0x78] sm:$0xff]
    %v327 = vld [vmem:[%s2] sm:$0x1]
    %v329 = vlaneseq
    %v330 = vshrl.u32 %v329, 7
    %v331 = vsub.s32 0, %v330
    %v332 = vrot.slane %v327, %v331
    %v334 = vadd.f32 %v311, %v332
    %v335 = vadd.f32 %v312, %v332
    %v336 = vadd.f32 %v313, %v332
    %v337 = vadd.f32 %v314, %v332
    %v338 = vadd.f32 %v315, %v332
    %v339 = vadd.f32 %v316, %v332
    %v340 = vadd.f32 %v317, %v332
    %v341 = vadd.f32 %v318, %v332
    %v342 = vadd.f32 %v319, %v332
    %v343 = vadd.f32 %v320, %v332
    %v344 = vadd.f32 %v321, %v332
    %v345 = vadd.f32 %v322, %v332
    %v346 = vadd.f32 %v323, %v332
    %v347 = vadd.f32 %v324, %v332
    %v348 = vadd.f32 %v325, %v332
    %v349 = vadd.f32 %v326, %v332
    %v350 = vtanh.pop %v334
    %v351 = vtanh.pop %v335
    %v352 = vtanh.pop %v336
    %v353 = vtanh.pop %v337
    %v354 = vtanh.pop %v338
    %v355 = vtanh.pop %v339
    %v356 = vtanh.pop %v340
    %v357 = vtanh.pop %v341
    %v358 = vtanh.pop %v342
    %v359 = vtanh.pop %v343
    %v360 = vtanh.pop %v344
    %v361 = vtanh.pop %v345
    %v362 = vtanh.pop %v346
    %v363 = vtanh.pop %v347
    %v364 = vtanh.pop %v348
    %v365 = vtanh.pop %v349
    %366 = vst [vmem:[%s3] sm:$0xff] %v350
    %367 = vst [vmem:[%s3 + $0x8] sm:$0xff] %v351
    %368 = vst [vmem:[%s3 + $0x10] sm:$0xff] %v352
    %369 = vst [vmem:[%s3 + $0x18] sm:$0xff] %v353
    %370 = vst [vmem:[%s3 + $0x20] sm:$0xff] %v354
    %371 = vst [vmem:[%s3 + $0x28] sm:$0xff] %v355
    %372 = vst [vmem:[%s3 + $0x30] sm:$0xff] %v356
    %373 = vst [vmem:[%s3 + $0x38] sm:$0xff] %v357
    %374 = vst [vmem:[%s3 + $0x40] sm:$0xff] %v358
    %375 = vst [vmem:[%s3 + $0x48] sm:$0xff] %v359
    %376 = vst [vmem:[%s3 + $0x50] sm:$0xff] %v360
    %377 = vst [vmem:[%s3 + $0x58] sm:$0xff] %v361
    %378 = vst [vmem:[%s3 + $0x60] sm:$0xff] %v362
    %379 = vst [vmem:[%s3 + $0x68] sm:$0xff] %v363
    %380 = vst [vmem:[%s3 + $0x70] sm:$0xff] %v364
    %381 = vst [vmem:[%s3 + $0x78] sm:$0xff] %v365
  $region21: #{_linear_jit.1} parent=0 // pred_fallthru
    _
  // Predicated region
  $region22: #{_linear_jit.1} parent=0 // pred_check
    _
  $region23: #{_linear_jit.1} parent=0 // pred_check_branch
    %383 = sbr.rel (0) target = $region25
  $region24: #{_linear_jit.1} parent=0 // pred_region
    _
  $region25: #{_linear_jit.1} parent=0 // pred_fallthru
    _
  // Predicated region
  $region26: #{_linear_jit.1} parent=0 // pred_check
    _
  $region27: #{_linear_jit.1} parent=0 // pred_check_branch
    %385 = sbr.rel (0) target = $region29
  $region28: #{_linear_jit.1} parent=0 // pred_region
    _
  $region29: #{_linear_jit.1} parent=0 // pred_fallthru
    _

</llo_original>
